<compile_context>
chip_gen: v5e
topology: v5e:2x2
jax: 0.10.0
libtpu: 0.0.40
codegen_flags: <defaults>
</compile_context>

<pallas_src>
import jax
import jax.numpy as jnp
from jax.experimental import pallas as pl
from jax.experimental.pallas import tpu as pltpu

EPS = 1e-5


# --------------------------------------------------------------------------- kernel ----
def residual_block_kernel(x_ref, bw1_ref, bw2_ref, bwsk_ref, fold_ref, bcast_ref,
                          s_top_ref, s_bot_ref,
                          g1_ref, bt1_ref, g2_ref, bt2_ref, gsk_ref, btsk_ref,
                          out_ref):
    NH, _ = x_ref.shape
    C1 = fold_ref.shape[-1]
    WC1 = bw1_ref.shape[-1]
    W = WC1 // C1
    inv_m = 1.0 / float(NH * W)                                  # 1 / (N*H*W)

    def dotf(a, b):
        return jnp.dot(a, b, preferred_element_type=jnp.float32)

    def bn_train(acc, gamma, beta):
        # Training-mode BN on a lane-packed (N*H, W*C) slab; one-pass biased stats.
        col_sum = jnp.sum(acc, axis=0, keepdims=True)            # (1, W*C)
        col_sq = jnp.sum(acc * acc, axis=0, keepdims=True)       # (1, W*C)
        ch_sum = dotf(col_sum, fold_ref[...])                    # (1, C)  fold W groups
        ch_sq = dotf(col_sq, fold_ref[...])                      # (1, C)
        mean = ch_sum * inv_m
        var = jnp.maximum(ch_sq * inv_m - mean * mean, 0.0)      # clamp (cancellation)
        scale = gamma * jax.lax.rsqrt(var + EPS)                 # (1, C)
        shift = beta - mean * scale                              # (1, C)
        scale_l = dotf(scale, bcast_ref[...])                    # (1, W*C) broadcast back
        shift_l = dotf(shift, bcast_ref[...])
        return acc * scale_l + shift_l

    x = x_ref[...]                                               # (N*H, W*C0)
    s_top = s_top_ref[...]                                       # (N*H, N*H)
    s_bot = s_bot_ref[...]

    # ---- conv1: H-shifts via constant shift matmuls, W-shifts inside banded weights ---
    x_up = dotf(s_top, x)                                        # row r -> x[r-1] (0 at top)
    x_dn = dotf(s_bot, x)                                        # row r -> x[r+1] (0 at bot)
    acc1 = dotf(x, bw1_ref[1]) + dotf(x_up, bw1_ref[0]) + dotf(x_dn, bw1_ref[2])
    y1 = jnp.maximum(bn_train(acc1, g1_ref[...], bt1_ref[...]), 0.0)      # (N*H, W*C1)

    # ---- skip path: 1x1 conv (block-diagonal matmul) + BN, no ReLU --------------------
    y_s = bn_train(dotf(x, bwsk_ref[...]), gsk_ref[...], btsk_ref[...])   # (N*H, W*C1)

    # ---- conv2: same structure, operating on y1 ----------------------------------------
    y1_up = dotf(s_top, y1)
    y1_dn = dotf(s_bot, y1)
    acc2 = dotf(y1, bw2_ref[1]) + dotf(y1_up, bw2_ref[0]) + dotf(y1_dn, bw2_ref[2])
    y2 = jnp.maximum(bn_train(acc2, g2_ref[...], bt2_ref[...]), 0.0)      # (N*H, W*C1)

    # ---- residual add; lane-dense store -------------------------------------------------
    out_ref[...] = y2 + y_s


# --------------------------------------------------------------------------- wrapper ---
def _banded_conv_weights(w_hwio, W):
    """(3,3,Cin,Cout) -> (3, W*Cin, W*Cout); W-direction zero padding encoded in the band."""
    outs = []
    for di in range(3):
        b = None
        for dj in range(3):
            s = jnp.eye(W, W, k=1 - dj, dtype=jnp.float32)       # selects w_in = w_out+dj-1
            term = jnp.kron(s, w_hwio[di, dj].astype(jnp.float32))
            b = term if b is None else b + term
        outs.append(b)
    return jnp.stack(outs, axis=0)


def _h_shift_matrices(N, H):
    """S_top @ x -> row r gets x[r-1] (zero at each image's top row); S_bot analogous."""
    NH = N * H
    rows = jnp.arange(NH)
    top_valid = ((rows % H) != 0).astype(jnp.float32)[:, None]
    bot_valid = ((rows % H) != (H - 1)).astype(jnp.float32)[:, None]
    s_top = jnp.eye(NH, k=-1, dtype=jnp.float32) * top_valid
    s_bot = jnp.eye(NH, k=1, dtype=jnp.float32) * bot_valid
    return s_top, s_bot


def _vreg_padded_bytes(shape, itemsize=4):
    s = (1, 1) + tuple(int(d) for d in shape)
    lane = -(-s[-1] // 128) * 128
    sub = -(-s[-2] // 8) * 8
    lead = 1
    for d in s[:-2]:
        lead *= int(d)
    return lead * sub * lane * itemsize


def residual_block_forward(x_nchw, params):
    """NCHW in / NCHW out, same as the PyTorch Residual_block (training-mode BN)."""
    w1, b1, g1, bt1, w2, b2, g2, bt2, wsk, bsk, gsk, btsk = params
    N, C0, H, W = x_nchw.shape
    C1 = w1.shape[-1]
    NH = N * H

    # Glue: NCHW -> lane-packed rows (N*H, W*C0).  No spatial padding of the data at all:
    # W padding lives in the banded weights, H padding in the shift matrices.
    x = jnp.transpose(x_nchw, (0, 2, 3, 1)).astype(jnp.float32)          # NHWC
    x_rows = x.reshape(NH, W * C0)

    bw1 = _banded_conv_weights(w1, W)                                    # (3, W*C0, W*C1)
    bw2 = _banded_conv_weights(w2, W)                                    # (3, W*C1, W*C1)
    bwsk = jnp.kron(jnp.eye(W, dtype=jnp.float32), wsk.astype(jnp.float32))  # (W*C0, W*C1)
    fold = jnp.kron(jnp.ones((W, 1), jnp.float32), jnp.eye(C1, dtype=jnp.float32))  # (W*C1, C1)
    bcast = jnp.transpose(fold)                                          # (C1, W*C1)
    s_top, s_bot = _h_shift_matrices(N, H)                               # (NH, NH) each

    inputs = (x_rows, bw1, bw2, bwsk, fold, bcast, s_top, s_bot,
              g1.reshape(1, C1), bt1.reshape(1, C1),
              g2.reshape(1, C1), bt2.reshape(1, C1),
              gsk.reshape(1, C1), btsk.reshape(1, C1))
    # NOTE: conv biases b1/b2/bsk are deliberately not passed (exact cancellation under
    # training-mode BN).

    out_shape = (NH, W * C1)
    footprint = (sum(_vreg_padded_bytes(a.shape) for a in inputs)
                 + _vreg_padded_bytes(out_shape))
    vmem_limit = int(min(64 * 2 ** 20, max(16 * 2 ** 20, 8 * footprint)))

    vmem = pl.BlockSpec(memory_space=pltpu.MemorySpace.VMEM)
    out_flat = pl.pallas_call(
        residual_block_kernel,
        out_shape=jax.ShapeDtypeStruct(out_shape, jnp.float32),
        in_specs=[vmem] * len(inputs),
        out_specs=vmem,
        compiler_params=pltpu.CompilerParams(vmem_limit_bytes=vmem_limit),
    )(*inputs)

    out = out_flat.reshape(N, H, W, C1)
    return jnp.transpose(out, (0, 3, 1, 2))                              # back to NCHW


# --------------------------------------------------------------------------- reference -
def ref_forward(x_nchw, params):
    """Pure-JAX reference with full PyTorch semantics (incl. conv biases, train-mode BN)."""
    w1, b1, g1, bt1, w2, b2, g2, bt2, wsk, bsk, gsk, btsk = params
    x = jnp.transpose(x_nchw, (0, 2, 3, 1)).astype(jnp.float32)

    def bn_train(y, g, b):
        m = jnp.mean(y, axis=(0, 1, 2))
        v = jnp.mean((y - m) ** 2, axis=(0, 1, 2))      # biased variance (training mode)
        return (y - m) / jnp.sqrt(v + EPS) * g + b

    def conv3(y, w, b):
        return jax.lax.conv_general_dilated(
            y, w, (1, 1), "SAME",
            dimension_numbers=("NHWC", "HWIO", "NHWC")) + b

    y = jnp.maximum(bn_train(conv3(x, w1, b1), g1, bt1), 0.0)
    y = jnp.maximum(bn_train(conv3(y, w2, b2), g2, bt2), 0.0)
    s = bn_train(jnp.einsum("nhwc,cd->nhwd", x, wsk) + bsk, gsk, btsk)
    return jnp.transpose(y + s, (0, 3, 1, 2))


# --------------------------------------------------------------------------- main ------
if __name__ == "__main__":
    N, C_in, H, W = 2, 4, 16, 16
    C_out = 8

    key = jax.random.PRNGKey(0)
    ks = jax.random.split(key, 12)
    x = jax.random.normal(ks[0], (N, C_in, H, W), jnp.float32)
    # Synthetic params matching nn.Conv2d / nn.BatchNorm2d shapes (conv weights in HWIO,
    # skip 1x1 weight as (C_in, C_out)).
    w1 = jax.random.normal(ks[1], (3, 3, C_in, C_out), jnp.float32) * 0.1
    b1 = jax.random.normal(ks[2], (C_out,), jnp.float32) * 0.05
    w2 = jax.random.normal(ks[3], (3, 3, C_out, C_out), jnp.float32) * 0.1
    b2 = jax.random.normal(ks[4], (C_out,), jnp.float32) * 0.05
    wsk = jax.random.normal(ks[5], (C_in, C_out), jnp.float32) * 0.1
    bsk = jax.random.normal(ks[6], (C_out,), jnp.float32) * 0.05
    g1 = 1.0 + 0.1 * jax.random.normal(ks[7], (C_out,), jnp.float32)
    bt1 = 0.05 * jax.random.normal(ks[8], (C_out,), jnp.float32)
    g2 = 1.0 + 0.1 * jax.random.normal(ks[9], (C_out,), jnp.float32)
    bt2 = 0.05 * jax.random.normal(ks[10], (C_out,), jnp.float32)
    gsk = 1.0 + 0.1 * jax.random.normal(ks[11], (C_out,), jnp.float32)
    btsk = jnp.zeros((C_out,), jnp.float32)
    params = (w1, b1, g1, bt1, w2, b2, g2, bt2, wsk, bsk, gsk, btsk)

    out = jax.jit(residual_block_forward)(x, params)
    jax.block_until_ready(out)

    ref = ref_forward(x, params)
    assert out.shape == (N, C_out, H, W), out.shape
    max_err = float(jnp.max(jnp.abs(out - ref)))
    assert jnp.allclose(out, ref, atol=2e-3, rtol=2e-3), max_err
    print("KERNEL_OK")
</pallas_src>

<mosaic_0001>
module attributes {stable_mosaic.version = 11 : i64} {
  func.func @residual_block_kernel(%arg0: memref<32x64xf32, #tpu.memory_space<vmem>>, %arg1: memref<3x64x128xf32, #tpu.memory_space<vmem>>, %arg2: memref<3x128x128xf32, #tpu.memory_space<vmem>>, %arg3: memref<64x128xf32, #tpu.memory_space<vmem>>, %arg4: memref<128x8xf32, #tpu.memory_space<vmem>>, %arg5: memref<8x128xf32, #tpu.memory_space<vmem>>, %arg6: memref<32x32xf32, #tpu.memory_space<vmem>>, %arg7: memref<32x32xf32, #tpu.memory_space<vmem>>, %arg8: memref<1x8xf32, #tpu.memory_space<vmem>>, %arg9: memref<1x8xf32, #tpu.memory_space<vmem>>, %arg10: memref<1x8xf32, #tpu.memory_space<vmem>>, %arg11: memref<1x8xf32, #tpu.memory_space<vmem>>, %arg12: memref<1x8xf32, #tpu.memory_space<vmem>>, %arg13: memref<1x8xf32, #tpu.memory_space<vmem>>, %arg14: memref<32x128xf32, #tpu.memory_space<vmem>>) attributes {dimension_semantics = [], scalar_prefetch = 0 : i64, scratch_operands = 0 : i64, tpu.core_type = #tpu.core_type<tc>} {
    %c0 = arith.constant 0 : index
    %c0_0 = arith.constant 0 : index
    %0 = vector.load %arg0[%c0, %c0_0] : memref<32x64xf32, #tpu.memory_space<vmem>>, vector<32x64xf32>
    %c0_1 = arith.constant 0 : index
    %c0_2 = arith.constant 0 : index
    %1 = vector.load %arg6[%c0_1, %c0_2] : memref<32x32xf32, #tpu.memory_space<vmem>>, vector<32x32xf32>
    %c0_3 = arith.constant 0 : index
    %c0_4 = arith.constant 0 : index
    %2 = vector.load %arg7[%c0_3, %c0_4] : memref<32x32xf32, #tpu.memory_space<vmem>>, vector<32x32xf32>
    %cst = arith.constant dense<0.000000e+00> : vector<32x64xf32>
    %3 = tpu.matmul %1, %0, %cst {dimension_numbers = #tpu.dot_dimension_numbers<[1], [0], [0], [1], [0, 0, 1, 1], [], []>} : vector<32x32xf32>, vector<32x64xf32>, vector<32x64xf32> -> vector<32x64xf32>
    %cst_5 = arith.constant dense<0.000000e+00> : vector<32x64xf32>
    %4 = tpu.matmul %2, %0, %cst_5 {dimension_numbers = #tpu.dot_dimension_numbers<[1], [0], [0], [1], [0, 0, 1, 1], [], []>} : vector<32x32xf32>, vector<32x64xf32>, vector<32x64xf32> -> vector<32x64xf32>
    %c1 = arith.constant 1 : index
    %c0_6 = arith.constant 0 : index
    %c0_7 = arith.constant 0 : index
    %5 = vector.load %arg1[%c1, %c0_6, %c0_7] : memref<3x64x128xf32, #tpu.memory_space<vmem>>, vector<1x64x128xf32>
    %6 = vector.shape_cast %5 : vector<1x64x128xf32> to vector<64x128xf32>
    %cst_8 = arith.constant dense<0.000000e+00> : vector<32x128xf32>
    %7 = tpu.matmul %0, %6, %cst_8 {dimension_numbers = #tpu.dot_dimension_numbers<[1], [0], [0], [1], [0, 0, 1, 1], [], []>} : vector<32x64xf32>, vector<64x128xf32>, vector<32x128xf32> -> vector<32x128xf32>
    %c0_9 = arith.constant 0 : index
    %c0_10 = arith.constant 0 : index
    %c0_11 = arith.constant 0 : index
    %8 = vector.load %arg1[%c0_9, %c0_10, %c0_11] : memref<3x64x128xf32, #tpu.memory_space<vmem>>, vector<1x64x128xf32>
    %9 = vector.shape_cast %8 : vector<1x64x128xf32> to vector<64x128xf32>
    %cst_12 = arith.constant dense<0.000000e+00> : vector<32x128xf32>
    %10 = tpu.matmul %3, %9, %cst_12 {dimension_numbers = #tpu.dot_dimension_numbers<[1], [0], [0], [1], [0, 0, 1, 1], [], []>} : vector<32x64xf32>, vector<64x128xf32>, vector<32x128xf32> -> vector<32x128xf32>
    %11 = arith.addf %7, %10 : vector<32x128xf32>
    %c2 = arith.constant 2 : index
    %c0_13 = arith.constant 0 : index
    %c0_14 = arith.constant 0 : index
    %12 = vector.load %arg1[%c2, %c0_13, %c0_14] : memref<3x64x128xf32, #tpu.memory_space<vmem>>, vector<1x64x128xf32>
    %13 = vector.shape_cast %12 : vector<1x64x128xf32> to vector<64x128xf32>
    %cst_15 = arith.constant dense<0.000000e+00> : vector<32x128xf32>
    %14 = tpu.matmul %4, %13, %cst_15 {dimension_numbers = #tpu.dot_dimension_numbers<[1], [0], [0], [1], [0, 0, 1, 1], [], []>} : vector<32x64xf32>, vector<64x128xf32>, vector<32x128xf32> -> vector<32x128xf32>
    %15 = arith.addf %11, %14 : vector<32x128xf32>
    %c0_16 = arith.constant 0 : index
    %c0_17 = arith.constant 0 : index
    %16 = vector.load %arg8[%c0_16, %c0_17] : memref<1x8xf32, #tpu.memory_space<vmem>>, vector<1x8xf32>
    %c0_18 = arith.constant 0 : index
    %c0_19 = arith.constant 0 : index
    %17 = vector.load %arg9[%c0_18, %c0_19] : memref<1x8xf32, #tpu.memory_space<vmem>>, vector<1x8xf32>
    %cst_20 = arith.constant dense<0.000000e+00> : vector<128xf32>
    %18 = vector.multi_reduction <add>, %15, %cst_20 [0] : vector<32x128xf32> to vector<128xf32>
    %19 = vector.shape_cast %18 : vector<128xf32> to vector<1x128xf32>
    %20 = arith.mulf %15, %15 : vector<32x128xf32>
    %cst_21 = arith.constant dense<0.000000e+00> : vector<128xf32>
    %21 = vector.multi_reduction <add>, %20, %cst_21 [0] : vector<32x128xf32> to vector<128xf32>
    %22 = vector.shape_cast %21 : vector<128xf32> to vector<1x128xf32>
    %c0_22 = arith.constant 0 : index
    %c0_23 = arith.constant 0 : index
    %23 = vector.load %arg4[%c0_22, %c0_23] : memref<128x8xf32, #tpu.memory_space<vmem>>, vector<128x8xf32>
    %cst_24 = arith.constant dense<0.000000e+00> : vector<1x8xf32>
    %24 = tpu.matmul %19, %23, %cst_24 {dimension_numbers = #tpu.dot_dimension_numbers<[1], [0], [0], [1], [0, 0, 1, 1], [], []>} : vector<1x128xf32>, vector<128x8xf32>, vector<1x8xf32> -> vector<1x8xf32>
    %c0_25 = arith.constant 0 : index
    %c0_26 = arith.constant 0 : index
    %25 = vector.load %arg4[%c0_25, %c0_26] : memref<128x8xf32, #tpu.memory_space<vmem>>, vector<128x8xf32>
    %cst_27 = arith.constant dense<0.000000e+00> : vector<1x8xf32>
    %26 = tpu.matmul %22, %25, %cst_27 {dimension_numbers = #tpu.dot_dimension_numbers<[1], [0], [0], [1], [0, 0, 1, 1], [], []>} : vector<1x128xf32>, vector<128x8xf32>, vector<1x8xf32> -> vector<1x8xf32>
    %cst_28 = arith.constant 0.001953125 : f32
    %27 = vector.broadcast %cst_28 : f32 to vector<1x8xf32>
    %28 = arith.mulf %24, %27 : vector<1x8xf32>
    %cst_29 = arith.constant 0.001953125 : f32
    %29 = vector.broadcast %cst_29 : f32 to vector<1x8xf32>
    %30 = arith.mulf %26, %29 : vector<1x8xf32>
    %31 = arith.mulf %28, %28 : vector<1x8xf32>
    %32 = arith.subf %30, %31 : vector<1x8xf32>
    %cst_30 = arith.constant 0.000000e+00 : f32
    %33 = vector.broadcast %cst_30 : f32 to vector<1x8xf32>
    %34 = arith.maximumf %32, %33 : vector<1x8xf32>
    %cst_31 = arith.constant 9.99999974E-6 : f32
    %35 = vector.broadcast %cst_31 : f32 to vector<1x8xf32>
    %36 = arith.addf %34, %35 : vector<1x8xf32>
    %37 = math.rsqrt %36 : vector<1x8xf32>
    %38 = arith.mulf %16, %37 : vector<1x8xf32>
    %39 = arith.mulf %28, %38 : vector<1x8xf32>
    %40 = arith.subf %17, %39 : vector<1x8xf32>
    %c0_32 = arith.constant 0 : index
    %c0_33 = arith.constant 0 : index
    %41 = vector.load %arg5[%c0_32, %c0_33] : memref<8x128xf32, #tpu.memory_space<vmem>>, vector<8x128xf32>
    %cst_34 = arith.constant dense<0.000000e+00> : vector<1x128xf32>
    %42 = tpu.matmul %38, %41, %cst_34 {dimension_numbers = #tpu.dot_dimension_numbers<[1], [0], [0], [1], [0, 0, 1, 1], [], []>} : vector<1x8xf32>, vector<8x128xf32>, vector<1x128xf32> -> vector<1x128xf32>
    %c0_35 = arith.constant 0 : index
    %c0_36 = arith.constant 0 : index
    %43 = vector.load %arg5[%c0_35, %c0_36] : memref<8x128xf32, #tpu.memory_space<vmem>>, vector<8x128xf32>
    %cst_37 = arith.constant dense<0.000000e+00> : vector<1x128xf32>
    %44 = tpu.matmul %40, %43, %cst_37 {dimension_numbers = #tpu.dot_dimension_numbers<[1], [0], [0], [1], [0, 0, 1, 1], [], []>} : vector<1x8xf32>, vector<8x128xf32>, vector<1x128xf32> -> vector<1x128xf32>
    %45 = vector.broadcast %42 : vector<1x128xf32> to vector<32x128xf32>
    %46 = arith.mulf %15, %45 : vector<32x128xf32>
    %47 = vector.broadcast %44 : vector<1x128xf32> to vector<32x128xf32>
    %48 = arith.addf %46, %47 : vector<32x128xf32>
    %cst_38 = arith.constant 0.000000e+00 : f32
    %49 = vector.broadcast %cst_38 : f32 to vector<32x128xf32>
    %50 = arith.maximumf %48, %49 : vector<32x128xf32>
    %c0_39 = arith.constant 0 : index
    %c0_40 = arith.constant 0 : index
    %51 = vector.load %arg3[%c0_39, %c0_40] : memref<64x128xf32, #tpu.memory_space<vmem>>, vector<64x128xf32>
    %cst_41 = arith.constant dense<0.000000e+00> : vector<32x128xf32>
    %52 = tpu.matmul %0, %51, %cst_41 {dimension_numbers = #tpu.dot_dimension_numbers<[1], [0], [0], [1], [0, 0, 1, 1], [], []>} : vector<32x64xf32>, vector<64x128xf32>, vector<32x128xf32> -> vector<32x128xf32>
    %c0_42 = arith.constant 0 : index
    %c0_43 = arith.constant 0 : index
    %53 = vector.load %arg12[%c0_42, %c0_43] : memref<1x8xf32, #tpu.memory_space<vmem>>, vector<1x8xf32>
    %c0_44 = arith.constant 0 : index
    %c0_45 = arith.constant 0 : index
    %54 = vector.load %arg13[%c0_44, %c0_45] : memref<1x8xf32, #tpu.memory_space<vmem>>, vector<1x8xf32>
    %cst_46 = arith.constant dense<0.000000e+00> : vector<128xf32>
    %55 = vector.multi_reduction <add>, %52, %cst_46 [0] : vector<32x128xf32> to vector<128xf32>
    %56 = vector.shape_cast %55 : vector<128xf32> to vector<1x128xf32>
    %57 = arith.mulf %52, %52 : vector<32x128xf32>
    %cst_47 = arith.constant dense<0.000000e+00> : vector<128xf32>
    %58 = vector.multi_reduction <add>, %57, %cst_47 [0] : vector<32x128xf32> to vector<128xf32>
    %59 = vector.shape_cast %58 : vector<128xf32> to vector<1x128xf32>
    %c0_48 = arith.constant 0 : index
    %c0_49 = arith.constant 0 : index
    %60 = vector.load %arg4[%c0_48, %c0_49] : memref<128x8xf32, #tpu.memory_space<vmem>>, vector<128x8xf32>
    %cst_50 = arith.constant dense<0.000000e+00> : vector<1x8xf32>
    %61 = tpu.matmul %56, %60, %cst_50 {dimension_numbers = #tpu.dot_dimension_numbers<[1], [0], [0], [1], [0, 0, 1, 1], [], []>} : vector<1x128xf32>, vector<128x8xf32>, vector<1x8xf32> -> vector<1x8xf32>
    %c0_51 = arith.constant 0 : index
    %c0_52 = arith.constant 0 : index
    %62 = vector.load %arg4[%c0_51, %c0_52] : memref<128x8xf32, #tpu.memory_space<vmem>>, vector<128x8xf32>
    %cst_53 = arith.constant dense<0.000000e+00> : vector<1x8xf32>
    %63 = tpu.matmul %59, %62, %cst_53 {dimension_numbers = #tpu.dot_dimension_numbers<[1], [0], [0], [1], [0, 0, 1, 1], [], []>} : vector<1x128xf32>, vector<128x8xf32>, vector<1x8xf32> -> vector<1x8xf32>
    %cst_54 = arith.constant 0.001953125 : f32
    %64 = vector.broadcast %cst_54 : f32 to vector<1x8xf32>
    %65 = arith.mulf %61, %64 : vector<1x8xf32>
    %cst_55 = arith.constant 0.001953125 : f32
    %66 = vector.broadcast %cst_55 : f32 to vector<1x8xf32>
    %67 = arith.mulf %63, %66 : vector<1x8xf32>
    %68 = arith.mulf %65, %65 : vector<1x8xf32>
    %69 = arith.subf %67, %68 : vector<1x8xf32>
    %cst_56 = arith.constant 0.000000e+00 : f32
    %70 = vector.broadcast %cst_56 : f32 to vector<1x8xf32>
    %71 = arith.maximumf %69, %70 : vector<1x8xf32>
    %cst_57 = arith.constant 9.99999974E-6 : f32
    %72 = vector.broadcast %cst_57 : f32 to vector<1x8xf32>
    %73 = arith.addf %71, %72 : vector<1x8xf32>
    %74 = math.rsqrt %73 : vector<1x8xf32>
    %75 = arith.mulf %53, %74 : vector<1x8xf32>
    %76 = arith.mulf %65, %75 : vector<1x8xf32>
    %77 = arith.subf %54, %76 : vector<1x8xf32>
    %c0_58 = arith.constant 0 : index
    %c0_59 = arith.constant 0 : index
    %78 = vector.load %arg5[%c0_58, %c0_59] : memref<8x128xf32, #tpu.memory_space<vmem>>, vector<8x128xf32>
    %cst_60 = arith.constant dense<0.000000e+00> : vector<1x128xf32>
    %79 = tpu.matmul %75, %78, %cst_60 {dimension_numbers = #tpu.dot_dimension_numbers<[1], [0], [0], [1], [0, 0, 1, 1], [], []>} : vector<1x8xf32>, vector<8x128xf32>, vector<1x128xf32> -> vector<1x128xf32>
    %c0_61 = arith.constant 0 : index
    %c0_62 = arith.constant 0 : index
    %80 = vector.load %arg5[%c0_61, %c0_62] : memref<8x128xf32, #tpu.memory_space<vmem>>, vector<8x128xf32>
    %cst_63 = arith.constant dense<0.000000e+00> : vector<1x128xf32>
    %81 = tpu.matmul %77, %80, %cst_63 {dimension_numbers = #tpu.dot_dimension_numbers<[1], [0], [0], [1], [0, 0, 1, 1], [], []>} : vector<1x8xf32>, vector<8x128xf32>, vector<1x128xf32> -> vector<1x128xf32>
    %82 = vector.broadcast %79 : vector<1x128xf32> to vector<32x128xf32>
    %83 = arith.mulf %52, %82 : vector<32x128xf32>
    %84 = vector.broadcast %81 : vector<1x128xf32> to vector<32x128xf32>
    %85 = arith.addf %83, %84 : vector<32x128xf32>
    %cst_64 = arith.constant dense<0.000000e+00> : vector<32x128xf32>
    %86 = tpu.matmul %1, %50, %cst_64 {dimension_numbers = #tpu.dot_dimension_numbers<[1], [0], [0], [1], [0, 0, 1, 1], [], []>} : vector<32x32xf32>, vector<32x128xf32>, vector<32x128xf32> -> vector<32x128xf32>
    %cst_65 = arith.constant dense<0.000000e+00> : vector<32x128xf32>
    %87 = tpu.matmul %2, %50, %cst_65 {dimension_numbers = #tpu.dot_dimension_numbers<[1], [0], [0], [1], [0, 0, 1, 1], [], []>} : vector<32x32xf32>, vector<32x128xf32>, vector<32x128xf32> -> vector<32x128xf32>
    %c1_66 = arith.constant 1 : index
    %c0_67 = arith.constant 0 : index
    %c0_68 = arith.constant 0 : index
    %88 = vector.load %arg2[%c1_66, %c0_67, %c0_68] : memref<3x128x128xf32, #tpu.memory_space<vmem>>, vector<1x128x128xf32>
    %89 = vector.shape_cast %88 : vector<1x128x128xf32> to vector<128x128xf32>
    %cst_69 = arith.constant dense<0.000000e+00> : vector<32x128xf32>
    %90 = tpu.matmul %50, %89, %cst_69 {dimension_numbers = #tpu.dot_dimension_numbers<[1], [0], [0], [1], [0, 0, 1, 1], [], []>} : vector<32x128xf32>, vector<128x128xf32>, vector<32x128xf32> -> vector<32x128xf32>
    %c0_70 = arith.constant 0 : index
    %c0_71 = arith.constant 0 : index
    %c0_72 = arith.constant 0 : index
    %91 = vector.load %arg2[%c0_70, %c0_71, %c0_72] : memref<3x128x128xf32, #tpu.memory_space<vmem>>, vector<1x128x128xf32>
    %92 = vector.shape_cast %91 : vector<1x128x128xf32> to vector<128x128xf32>
    %cst_73 = arith.constant dense<0.000000e+00> : vector<32x128xf32>
    %93 = tpu.matmul %86, %92, %cst_73 {dimension_numbers = #tpu.dot_dimension_numbers<[1], [0], [0], [1], [0, 0, 1, 1], [], []>} : vector<32x128xf32>, vector<128x128xf32>, vector<32x128xf32> -> vector<32x128xf32>
    %94 = arith.addf %90, %93 : vector<32x128xf32>
    %c2_74 = arith.constant 2 : index
    %c0_75 = arith.constant 0 : index
    %c0_76 = arith.constant 0 : index
    %95 = vector.load %arg2[%c2_74, %c0_75, %c0_76] : memref<3x128x128xf32, #tpu.memory_space<vmem>>, vector<1x128x128xf32>
    %96 = vector.shape_cast %95 : vector<1x128x128xf32> to vector<128x128xf32>
    %cst_77 = arith.constant dense<0.000000e+00> : vector<32x128xf32>
    %97 = tpu.matmul %87, %96, %cst_77 {dimension_numbers = #tpu.dot_dimension_numbers<[1], [0], [0], [1], [0, 0, 1, 1], [], []>} : vector<32x128xf32>, vector<128x128xf32>, vector<32x128xf32> -> vector<32x128xf32>
    %98 = arith.addf %94, %97 : vector<32x128xf32>
    %c0_78 = arith.constant 0 : index
    %c0_79 = arith.constant 0 : index
    %99 = vector.load %arg10[%c0_78, %c0_79] : memref<1x8xf32, #tpu.memory_space<vmem>>, vector<1x8xf32>
    %c0_80 = arith.constant 0 : index
    %c0_81 = arith.constant 0 : index
    %100 = vector.load %arg11[%c0_80, %c0_81] : memref<1x8xf32, #tpu.memory_space<vmem>>, vector<1x8xf32>
    %cst_82 = arith.constant dense<0.000000e+00> : vector<128xf32>
    %101 = vector.multi_reduction <add>, %98, %cst_82 [0] : vector<32x128xf32> to vector<128xf32>
    %102 = vector.shape_cast %101 : vector<128xf32> to vector<1x128xf32>
    %103 = arith.mulf %98, %98 : vector<32x128xf32>
    %cst_83 = arith.constant dense<0.000000e+00> : vector<128xf32>
    %104 = vector.multi_reduction <add>, %103, %cst_83 [0] : vector<32x128xf32> to vector<128xf32>
    %105 = vector.shape_cast %104 : vector<128xf32> to vector<1x128xf32>
    %c0_84 = arith.constant 0 : index
    %c0_85 = arith.constant 0 : index
    %106 = vector.load %arg4[%c0_84, %c0_85] : memref<128x8xf32, #tpu.memory_space<vmem>>, vector<128x8xf32>
    %cst_86 = arith.constant dense<0.000000e+00> : vector<1x8xf32>
    %107 = tpu.matmul %102, %106, %cst_86 {dimension_numbers = #tpu.dot_dimension_numbers<[1], [0], [0], [1], [0, 0, 1, 1], [], []>} : vector<1x128xf32>, vector<128x8xf32>, vector<1x8xf32> -> vector<1x8xf32>
    %c0_87 = arith.constant 0 : index
    %c0_88 = arith.constant 0 : index
    %108 = vector.load %arg4[%c0_87, %c0_88] : memref<128x8xf32, #tpu.memory_space<vmem>>, vector<128x8xf32>
    %cst_89 = arith.constant dense<0.000000e+00> : vector<1x8xf32>
    %109 = tpu.matmul %105, %108, %cst_89 {dimension_numbers = #tpu.dot_dimension_numbers<[1], [0], [0], [1], [0, 0, 1, 1], [], []>} : vector<1x128xf32>, vector<128x8xf32>, vector<1x8xf32> -> vector<1x8xf32>
    %cst_90 = arith.constant 0.001953125 : f32
    %110 = vector.broadcast %cst_90 : f32 to vector<1x8xf32>
    %111 = arith.mulf %107, %110 : vector<1x8xf32>
    %cst_91 = arith.constant 0.001953125 : f32
    %112 = vector.broadcast %cst_91 : f32 to vector<1x8xf32>
    %113 = arith.mulf %109, %112 : vector<1x8xf32>
    %114 = arith.mulf %111, %111 : vector<1x8xf32>
    %115 = arith.subf %113, %114 : vector<1x8xf32>
    %cst_92 = arith.constant 0.000000e+00 : f32
    %116 = vector.broadcast %cst_92 : f32 to vector<1x8xf32>
    %117 = arith.maximumf %115, %116 : vector<1x8xf32>
    %cst_93 = arith.constant 9.99999974E-6 : f32
    %118 = vector.broadcast %cst_93 : f32 to vector<1x8xf32>
    %119 = arith.addf %117, %118 : vector<1x8xf32>
    %120 = math.rsqrt %119 : vector<1x8xf32>
    %121 = arith.mulf %99, %120 : vector<1x8xf32>
    %122 = arith.mulf %111, %121 : vector<1x8xf32>
    %123 = arith.subf %100, %122 : vector<1x8xf32>
    %c0_94 = arith.constant 0 : index
    %c0_95 = arith.constant 0 : index
    %124 = vector.load %arg5[%c0_94, %c0_95] : memref<8x128xf32, #tpu.memory_space<vmem>>, vector<8x128xf32>
    %cst_96 = arith.constant dense<0.000000e+00> : vector<1x128xf32>
    %125 = tpu.matmul %121, %124, %cst_96 {dimension_numbers = #tpu.dot_dimension_numbers<[1], [0], [0], [1], [0, 0, 1, 1], [], []>} : vector<1x8xf32>, vector<8x128xf32>, vector<1x128xf32> -> vector<1x128xf32>
    %c0_97 = arith.constant 0 : index
    %c0_98 = arith.constant 0 : index
    %126 = vector.load %arg5[%c0_97, %c0_98] : memref<8x128xf32, #tpu.memory_space<vmem>>, vector<8x128xf32>
    %cst_99 = arith.constant dense<0.000000e+00> : vector<1x128xf32>
    %127 = tpu.matmul %123, %126, %cst_99 {dimension_numbers = #tpu.dot_dimension_numbers<[1], [0], [0], [1], [0, 0, 1, 1], [], []>} : vector<1x8xf32>, vector<8x128xf32>, vector<1x128xf32> -> vector<1x128xf32>
    %128 = vector.broadcast %125 : vector<1x128xf32> to vector<32x128xf32>
    %129 = arith.mulf %98, %128 : vector<32x128xf32>
    %130 = vector.broadcast %127 : vector<1x128xf32> to vector<32x128xf32>
    %131 = arith.addf %129, %130 : vector<32x128xf32>
    %cst_100 = arith.constant 0.000000e+00 : f32
    %132 = vector.broadcast %cst_100 : f32 to vector<32x128xf32>
    %133 = arith.maximumf %131, %132 : vector<32x128xf32>
    %134 = arith.addf %133, %85 : vector<32x128xf32>
    %c0_101 = arith.constant 0 : index
    %c0_102 = arith.constant 0 : index
    %135 = vector.load %arg14[%c0_101, %c0_102] : memref<32x128xf32, #tpu.memory_space<vmem>>, vector<32x128xf32>
    tpu.vector_store %arg14[%c0_101, %c0_102], %134 {strides = array<i32>} : memref<32x128xf32, #tpu.memory_space<vmem>>, vector<32x128xf32>,
    return
  }
}

</mosaic_0001>

<llo_original>
// kernel: residual_block_forward.1
$region0: #{residual_block_forward.1}
  #allocation0 [shape = 'u32[]', space=smem, size = 0x4, offset = 0x4, fixed_abs, tag = 'smem constant byte address 0x4 - core index']
  #allocation1 [shape = 'u32[72,128]{1,0:T(1,128)}', space=vmem, size = 0x9000, scoped, tag = 'internal scratch']
  %s0 = inlined_call_operand.vmem [shape: f32[32,64], index: 0, kind: input, shape index: {}]
  %s1 = inlined_call_operand.vmem [shape: f32[3,64,128], index: 1, kind: input, shape index: {}]
  %s2 = inlined_call_operand.vmem [shape: f32[3,128,128], index: 2, kind: input, shape index: {}]
  %s3 = inlined_call_operand.vmem [shape: f32[64,128], index: 3, kind: input, shape index: {}]
  %s4 = inlined_call_operand.vmem [shape: f32[128,8], index: 4, kind: input, shape index: {}]
  %s5 = inlined_call_operand.vmem [shape: f32[8,128], index: 5, kind: input, shape index: {}]
  %s6 = inlined_call_operand.vmem [shape: f32[32,32], index: 6, kind: input, shape index: {}]
  %s7 = inlined_call_operand.vmem [shape: f32[32,32], index: 7, kind: input, shape index: {}]
  %s8 = inlined_call_operand.vmem [shape: f32[1,8], index: 8, kind: input, shape index: {}]
  %s9 = inlined_call_operand.vmem [shape: f32[1,8], index: 9, kind: input, shape index: {}]
  %s10 = inlined_call_operand.vmem [shape: f32[1,8], index: 10, kind: input, shape index: {}]
  %s11 = inlined_call_operand.vmem [shape: f32[1,8], index: 11, kind: input, shape index: {}]
  %s12 = inlined_call_operand.vmem [shape: f32[1,8], index: 12, kind: input, shape index: {}]
  %s13 = inlined_call_operand.vmem [shape: f32[1,8], index: 13, kind: input, shape index: {}]
  %s14 = inlined_call_operand.vmem [shape: f32[32,128], index: 14, kind: output, shape index: {}]
  %s15 = sld [smem:[#allocation0]]
  $region66: #{residual_block_forward.1} parent=0
    _
  %s17 = ssub.s32 1, %s15
  %s18 = scalar_select 0, %s17, %s15
  // Predicated region
  $region2: #{residual_block_forward.1} parent=0 // pred_check
    _
  $region3: #{residual_block_forward.1} parent=0 // pred_check_branch
    %20 = sbr.rel (0) target = $region5
  $region4: #{residual_block_forward.1} parent=0 // pred_region
    _
  $region5: #{residual_block_forward.1} parent=0 // pred_fallthru
    _
  // Predicated region
  $region6: #{residual_block_forward.1} parent=0 // pred_check
    _
  $region7: #{residual_block_forward.1} parent=0 // pred_check_branch
    %22 = sbr.rel (0) target = $region9
  $region8: #{residual_block_forward.1} parent=0 // pred_region
    _
  $region9: #{residual_block_forward.1} parent=0 // pred_fallthru
    _
  // Predicated region
  $region10: #{residual_block_forward.1} parent=0 // pred_check
    _
  $region11: #{residual_block_forward.1} parent=0 // pred_check_branch
    %24 = sbr.rel (0) target = $region13
  $region12: #{residual_block_forward.1} parent=0 // pred_region
    _
  $region13: #{residual_block_forward.1} parent=0 // pred_fallthru
    _
  // Predicated region
  $region14: #{residual_block_forward.1} parent=0 // pred_check
    _
  $region15: #{residual_block_forward.1} parent=0 // pred_check_branch
    %26 = sbr.rel (0) target = $region17
  $region16: #{residual_block_forward.1} parent=0 // pred_region
    _
  $region17: #{residual_block_forward.1} parent=0 // pred_fallthru
    _
  // Predicated region
  $region18: #{residual_block_forward.1} parent=0 // pred_check
    _
  $region19: #{residual_block_forward.1} parent=0 // pred_check_branch
    %28 = sbr.rel (0) target = $region21
  $region20: #{residual_block_forward.1} parent=0 // pred_region
    _
  $region21: #{residual_block_forward.1} parent=0 // pred_fallthru
    _
  // Predicated region
  $region22: #{residual_block_forward.1} parent=0 // pred_check
    _
  $region23: #{residual_block_forward.1} parent=0 // pred_check_branch
    %30 = sbr.rel (0) target = $region25
  $region24: #{residual_block_forward.1} parent=0 // pred_region
    _
  $region25: #{residual_block_forward.1} parent=0 // pred_fallthru
    _
  // Predicated region
  $region26: #{residual_block_forward.1} parent=0 // pred_check
    _
  $region27: #{residual_block_forward.1} parent=0 // pred_check_branch
    %32 = sbr.rel (0) target = $region29
  $region28: #{residual_block_forward.1} parent=0 // pred_region
    _
  $region29: #{residual_block_forward.1} parent=0 // pred_fallthru
    _
  // Predicated region
  $region30: #{residual_block_forward.1} parent=0 // pred_check
    _
  $region31: #{residual_block_forward.1} parent=0 // pred_check_branch
    %34 = sbr.rel (0) target = $region33
  $region32: #{residual_block_forward.1} parent=0 // pred_region
    _
  $region33: #{residual_block_forward.1} parent=0 // pred_fallthru
    _
  // Predicated region
  $region34: #{residual_block_forward.1} parent=0 // pred_check
    _
  $region35: #{residual_block_forward.1} parent=0 // pred_check_branch
    %36 = sbr.rel (0) target = $region37
  $region36: #{residual_block_forward.1} parent=0 // pred_region
    _
  $region37: #{residual_block_forward.1} parent=0 // pred_fallthru
    _
  // Predicated region
  $region38: #{residual_block_forward.1} parent=0 // pred_check
    _
  $region39: #{residual_block_forward.1} parent=0 // pred_check_branch
    %38 = sbr.rel (0) target = $region41
  $region40: #{residual_block_forward.1} parent=0 // pred_region
    _
  $region41: #{residual_block_forward.1} parent=0 // pred_fallthru
    _
  // Predicated region
  $region42: #{residual_block_forward.1} parent=0 // pred_check
    _
  $region43: #{residual_block_forward.1} parent=0 // pred_check_branch
    %40 = sbr.rel (0) target = $region45
  $region44: #{residual_block_forward.1} parent=0 // pred_region
    _
  $region45: #{residual_block_forward.1} parent=0 // pred_fallthru
    _
  // Predicated region
  $region46: #{residual_block_forward.1} parent=0 // pred_check
    _
  $region47: #{residual_block_forward.1} parent=0 // pred_check_branch
    %42 = sbr.rel (0) target = $region49
  $region48: #{residual_block_forward.1} parent=0 // pred_region
    _
  $region49: #{residual_block_forward.1} parent=0 // pred_fallthru
    _
  // Predicated region
  $region50: #{residual_block_forward.1} parent=0 // pred_check
    _
  $region51: #{residual_block_forward.1} parent=0 // pred_check_branch
    %44 = sbr.rel (0) target = $region53
  $region52: #{residual_block_forward.1} parent=0 // pred_region
    _
  $region53: #{residual_block_forward.1} parent=0 // pred_fallthru
    _
  // Predicated region
  $region54: #{residual_block_forward.1} parent=0 // pred_check
    _
  $region55: #{residual_block_forward.1} parent=0 // pred_check_branch
    %46 = sbr.rel (0) target = $region57
  $region56: #{residual_block_forward.1} parent=0 // pred_region
    _
  $region57: #{residual_block_forward.1} parent=0 // pred_fallthru
    _
  %v47 = vld [vmem:[%s0] sm:$0xff]
  %v48 = vld [vmem:[%s0 + $0x8] sm:$0xff]
  %v49 = vld [vmem:[%s0 + $0x10] sm:$0xff]
  %v50 = vld [vmem:[%s0 + $0x18] sm:$0xff]
  %v51 = vld [vmem:[%s6] sm:$0xff]
  %v52 = vld [vmem:[%s6 + $0x8] sm:$0xff]
  %v53 = vld [vmem:[%s6 + $0x10] sm:$0xff]
  %v54 = vld [vmem:[%s6 + $0x18] sm:$0xff]
  %v55 = vld [vmem:[%s7] sm:$0xff]
  %v56 = vld [vmem:[%s7 + $0x8] sm:$0xff]
  %v57 = vld [vmem:[%s7 + $0x10] sm:$0xff]
  %v58 = vld [vmem:[%s7 + $0x18] sm:$0xff]
  %vm59 = vcmask 261120
  %v61 = vsel %vm59, %v51, 0
  %v64 = vsel %vm59, %v52, 0
  %v67 = vsel %vm59, %v53, 0
  %v70 = vsel %vm59, %v54, 0
  %72 = vmatpush.msra.mxu0 0.0
  %73 = vmatpush.msra.mxu0 0.0
  %74 = vmatpush.msra.mxu0 0.0
  %75 = vmatpush.msra.mxu0 0.0
  %76 = vmatpush.msra.mxu0 0.0
  %77 = vmatpush.msra.mxu0 0.0
  %78 = vmatpush.msra.mxu0 0.0
  %79 = vmatpush.msra.mxu0 0.0
  %80 = vmatpush.msra.mxu0 0.0
  %81 = vmatpush.msra.mxu0 0.0
  %82 = vmatpush.msra.mxu0 0.0
  %83 = vmatpush.msra.mxu0 0.0
  %84 = vmatpush.msra.mxu0 %v50
  %85 = vmatpush.msra.mxu0 %v49
  %86 = vmatpush.msra.mxu0 %v48
  %87 = vmatpush.msra.mxu0 %v47
  %88 = vmatmul.f32.gmra.mxu0 %v61
  %v89 = vpop.f32.mrf.mxu0
  %v90 = vadd.f32 0.0, %v89
  %91 = vmatmul.f32.gmra.mxu0 %v64
  %v92 = vpop.f32.mrf.mxu0
  %v93 = vadd.f32 0.0, %v92
  %94 = vmatmul.f32.gmra.mxu0 %v67
  %v95 = vpop.f32.mrf.mxu0
  %v96 = vadd.f32 0.0, %v95
  %97 = vmatmul.f32.gmra.mxu0 %v70
  %v98 = vpop.f32.mrf.mxu0
  %v99 = vadd.f32 0.0, %v98
  %100 = vdwg.mxu0
  %v102 = vsel %vm59, %v55, 0
  %v105 = vsel %vm59, %v56, 0
  %v108 = vsel %vm59, %v57, 0
  %v111 = vsel %vm59, %v58, 0
  %113 = vmatpush.msra.mxu0 0.0
  %114 = vmatpush.msra.mxu0 0.0
  %115 = vmatpush.msra.mxu0 0.0
  %116 = vmatpush.msra.mxu0 0.0
  %117 = vmatpush.msra.mxu0 0.0
  %118 = vmatpush.msra.mxu0 0.0
  %119 = vmatpush.msra.mxu0 0.0
  %120 = vmatpush.msra.mxu0 0.0
  %121 = vmatpush.msra.mxu0 0.0
  %122 = vmatpush.msra.mxu0 0.0
  %123 = vmatpush.msra.mxu0 0.0
  %124 = vmatpush.msra.mxu0 0.0
  %125 = vmatpush.msra.mxu0 %v50
  %126 = vmatpush.msra.mxu0 %v49
  %127 = vmatpush.msra.mxu0 %v48
  %128 = vmatpush.msra.mxu0 %v47
  %129 = vmatmul.f32.gmra.mxu0 %v102
  %v130 = vpop.f32.mrf.mxu0
  %v131 = vadd.f32 0.0, %v130
  %132 = vmatmul.f32.gmra.mxu0 %v105
  %v133 = vpop.f32.mrf.mxu0
  %v134 = vadd.f32 0.0, %v133
  %135 = vmatmul.f32.gmra.mxu0 %v108
  %v136 = vpop.f32.mrf.mxu0
  %v137 = vadd.f32 0.0, %v136
  %138 = vmatmul.f32.gmra.mxu0 %v111
  %v139 = vpop.f32.mrf.mxu0
  %v140 = vadd.f32 0.0, %v139
  %141 = vdwg.mxu0
  %s142 = scalar_lea.vmem %s1, 64
  %v143 = vld [vmem:[%s142] sm:$0xff]
  %v144 = vld [vmem:[%s142 + $0x8] sm:$0xff]
  %v145 = vld [vmem:[%s142 + $0x10] sm:$0xff]
  %v146 = vld [vmem:[%s142 + $0x18] sm:$0xff]
  %v147 = vld [vmem:[%s142 + $0x20] sm:$0xff]
  %v148 = vld [vmem:[%s142 + $0x28] sm:$0xff]
  %v149 = vld [vmem:[%s142 + $0x30] sm:$0xff]
  %v150 = vld [vmem:[%s142 + $0x38] sm:$0xff]
  %v151 = vld [vmem:[%s1] sm:$0xff]
  %v152 = vld [vmem:[%s1 + $0x8] sm:$0xff]
  %v153 = vld [vmem:[%s1 + $0x10] sm:$0xff]
  %v154 = vld [vmem:[%s1 + $0x18] sm:$0xff]
  %v155 = vld [vmem:[%s1 + $0x20] sm:$0xff]
  %v156 = vld [vmem:[%s1 + $0x28] sm:$0xff]
  %v157 = vld [vmem:[%s1 + $0x30] sm:$0xff]
  %v158 = vld [vmem:[%s1 + $0x38] sm:$0xff]
  %vm159 = vcmask 523264
  %v161 = vsel %vm159, %v90, 0
  %v164 = vsel %vm159, %v93, 0
  %v167 = vsel %vm159, %v96, 0
  %v170 = vsel %vm159, %v99, 0
  %172 = vmatpush.msra.mxu0 0.0
  %173 = vmatpush.msra.mxu0 0.0
  %174 = vmatpush.msra.mxu0 0.0
  %175 = vmatpush.msra.mxu0 0.0
  %176 = vmatpush.msra.mxu0 0.0
  %177 = vmatpush.msra.mxu0 0.0
  %178 = vmatpush.msra.mxu0 0.0
  %179 = vmatpush.msra.mxu0 0.0
  %180 = vmatpush.msra.mxu0 %v158
  %181 = vmatpush.msra.mxu0 %v157
  %182 = vmatpush.msra.mxu0 %v156
  %183 = vmatpush.msra.mxu0 %v155
  %184 = vmatpush.msra.mxu0 %v154
  %185 = vmatpush.msra.mxu0 %v153
  %186 = vmatpush.msra.mxu0 %v152
  %187 = vmatpush.msra.mxu0 %v151
  %188 = vmatmul.f32.gmra.mxu0 %v161
  %v189 = vpop.f32.mrf.mxu0
  %v190 = vadd.f32 0.0, %v189
  %191 = vmatmul.f32.gmra.mxu0 %v164
  %v192 = vpop.f32.mrf.mxu0
  %v193 = vadd.f32 0.0, %v192
  %194 = vmatmul.f32.gmra.mxu0 %v167
  %v195 = vpop.f32.mrf.mxu0
  %v196 = vadd.f32 0.0, %v195
  %197 = vmatmul.f32.gmra.mxu0 %v170
  %v198 = vpop.f32.mrf.mxu0
  %v199 = vadd.f32 0.0, %v198
  %200 = vdwg.mxu0
  %v202 = vsel %vm159, %v47, 0
  %v205 = vsel %vm159, %v48, 0
  %v208 = vsel %vm159, %v49, 0
  %v211 = vsel %vm159, %v50, 0
  %213 = vmatpush.msra.mxu0 0.0
  %214 = vmatpush.msra.mxu0 0.0
  %215 = vmatpush.msra.mxu0 0.0
  %216 = vmatpush.msra.mxu0 0.0
  %217 = vmatpush.msra.mxu0 0.0
  %218 = vmatpush.msra.mxu0 0.0
  %219 = vmatpush.msra.mxu0 0.0
  %220 = vmatpush.msra.mxu0 0.0
  %221 = vmatpush.msra.mxu0 %v150
  %222 = vmatpush.msra.mxu0 %v149
  %223 = vmatpush.msra.mxu0 %v148
  %224 = vmatpush.msra.mxu0 %v147
  %225 = vmatpush.msra.mxu0 %v146
  %226 = vmatpush.msra.mxu0 %v145
  %227 = vmatpush.msra.mxu0 %v144
  %228 = vmatpush.msra.mxu0 %v143
  %229 = vmatmul.f32.gmra.mxu0 %v202
  %v230 = vpop.f32.mrf.mxu0
  %v231 = vadd.f32 %v190, %v230
  %232 = vmatmul.f32.gmra.mxu0 %v205
  %v233 = vpop.f32.mrf.mxu0
  %v234 = vadd.f32 %v193, %v233
  %235 = vmatmul.f32.gmra.mxu0 %v208
  %v236 = vpop.f32.mrf.mxu0
  %v237 = vadd.f32 %v196, %v236
  %238 = vmatmul.f32.gmra.mxu0 %v211
  %v239 = vpop.f32.mrf.mxu0
  %v240 = vadd.f32 %v199, %v239
  %241 = vdwg.mxu0
  %s242 = scalar_lea.vmem %s1, 128
  %v243 = vld [vmem:[%s242] sm:$0xff]
  %v244 = vld [vmem:[%s242 + $0x8] sm:$0xff]
  %v245 = vld [vmem:[%s242 + $0x10] sm:$0xff]
  %v246 = vld [vmem:[%s242 + $0x18] sm:$0xff]
  %v247 = vld [vmem:[%s242 + $0x20] sm:$0xff]
  %v248 = vld [vmem:[%s242 + $0x28] sm:$0xff]
  %v249 = vld [vmem:[%s242 + $0x30] sm:$0xff]
  %v250 = vld [vmem:[%s242 + $0x38] sm:$0xff]
  %v252 = vsel %vm159, %v131, 0
  %v255 = vsel %vm159, %v134, 0
  %v258 = vsel %vm159, %v137, 0
  %v261 = vsel %vm159, %v140, 0
  %263 = vmatpush.msra.mxu0 0.0
  %264 = vmatpush.msra.mxu0 0.0
  %265 = vmatpush.msra.mxu0 0.0
  %266 = vmatpush.msra.mxu0 0.0
  %267 = vmatpush.msra.mxu0 0.0
  %268 = vmatpush.msra.mxu0 0.0
  %269 = vmatpush.msra.mxu0 0.0
  %270 = vmatpush.msra.mxu0 0.0
  %271 = vmatpush.msra.mxu0 %v250
  %272 = vmatpush.msra.mxu0 %v249
  %273 = vmatpush.msra.mxu0 %v248
  %274 = vmatpush.msra.mxu0 %v247
  %275 = vmatpush.msra.mxu0 %v246
  %276 = vmatpush.msra.mxu0 %v245
  %277 = vmatpush.msra.mxu0 %v244
  %278 = vmatpush.msra.mxu0 %v243
  %279 = vmatmul.f32.gmra.mxu0 %v252
  %v280 = vpop.f32.mrf.mxu0
  %v281 = vadd.f32 0.0, %v280
  %282 = vmatmul.f32.gmra.mxu0 %v255
  %v283 = vpop.f32.mrf.mxu0
  %v284 = vadd.f32 0.0, %v283
  %285 = vmatmul.f32.gmra.mxu0 %v258
  %v286 = vpop.f32.mrf.mxu0
  %v287 = vadd.f32 0.0, %v286
  %288 = vmatmul.f32.gmra.mxu0 %v261
  %v289 = vpop.f32.mrf.mxu0
  %v290 = vadd.f32 0.0, %v289
  %291 = vdwg.mxu0
  %v292 = vadd.f32 %v231, %v281
  %v293 = vadd.f32 %v234, %v284
  %v294 = vadd.f32 %v237, %v287
  %v295 = vadd.f32 %v240, %v290
  %v296 = vld [vmem:[%s8] sm:$0x1]
  %v297 = vld [vmem:[%s9] sm:$0x1]
  %v298 = vadd.f32 %v292, %v293
  %v299 = vadd.f32 %v298, %v294
  %v300 = vadd.f32 %v299, %v295
  %v301 = vrot.slane %v300, 4
  %v302 = vadd.f32 %v300, %v301
  %v303 = vrot.slane %v302, 2
  %v304 = vadd.f32 %v302, %v303
  %v305 = vrot.slane %v304, 1
  %v306 = vadd.f32 %v304, %v305
  %v307 = vmul.f32 %v292, %v292
  %v308 = vmul.f32 %v293, %v293
  %v309 = vmul.f32 %v294, %v294
  %v310 = vmul.f32 %v295, %v295
  %v311 = vadd.f32 %v307, %v308
  %v312 = vadd.f32 %v311, %v309
  %v313 = vadd.f32 %v312, %v310
  %v314 = vrot.slane %v313, 4
  %v315 = vadd.f32 %v313, %v314
  %v316 = vrot.slane %v315, 2
  %v317 = vadd.f32 %v315, %v316
  %v318 = vrot.slane %v317, 1
  %v319 = vadd.f32 %v317, %v318
  %v320 = vld [vmem:[%s4] sm:$0xff]
  %v321 = vld [vmem:[%s4 + $0x8] sm:$0xff]
  %v322 = vld [vmem:[%s4 + $0x10] sm:$0xff]
  %v323 = vld [vmem:[%s4 + $0x18] sm:$0xff]
  %v324 = vld [vmem:[%s4 + $0x20] sm:$0xff]
  %v325 = vld [vmem:[%s4 + $0x28] sm:$0xff]
  %v326 = vld [vmem:[%s4 + $0x30] sm:$0xff]
  %v327 = vld [vmem:[%s4 + $0x38] sm:$0xff]
  %v328 = vld [vmem:[%s4 + $0x40] sm:$0xff]
  %v329 = vld [vmem:[%s4 + $0x48] sm:$0xff]
  %v330 = vld [vmem:[%s4 + $0x50] sm:$0xff]
  %v331 = vld [vmem:[%s4 + $0x58] sm:$0xff]
  %v332 = vld [vmem:[%s4 + $0x60] sm:$0xff]
  %v333 = vld [vmem:[%s4 + $0x68] sm:$0xff]
  %v334 = vld [vmem:[%s4 + $0x70] sm:$0xff]
  %v335 = vld [vmem:[%s4 + $0x78] sm:$0xff]
  %336 = vmatpush.msra.mxu0 %v335
  %337 = vmatpush.msra.mxu0 %v334
  %338 = vmatpush.msra.mxu0 %v333
  %339 = vmatpush.msra.mxu0 %v332
  %340 = vmatpush.msra.mxu0 %v331
  %341 = vmatpush.msra.mxu0 %v330
  %342 = vmatpush.msra.mxu0 %v329
  %343 = vmatpush.msra.mxu0 %v328
  %344 = vmatpush.msra.mxu0 %v327
  %345 = vmatpush.msra.mxu0 %v326
  %346 = vmatpush.msra.mxu0 %v325
  %347 = vmatpush.msra.mxu0 %v324
  %348 = vmatpush.msra.mxu0 %v323
  %349 = vmatpush.msra.mxu0 %v322
  %350 = vmatpush.msra.mxu0 %v321
  %351 = vmatpush.msra.mxu0 %v320
  %352 = vmatmul.f32.gmra.mxu0 %v306
  %v353 = vpop.f32.mrf.mxu0
  %v354 = vadd.f32 0.0, %v353
  %355 = vdwg.mxu0
  %356 = vmatpush.msra.mxu0 %v335
  %357 = vmatpush.msra.mxu0 %v334
  %358 = vmatpush.msra.mxu0 %v333
  %359 = vmatpush.msra.mxu0 %v332
  %360 = vmatpush.msra.mxu0 %v331
  %361 = vmatpush.msra.mxu0 %v330
  %362 = vmatpush.msra.mxu0 %v329
  %363 = vmatpush.msra.mxu0 %v328
  %364 = vmatpush.msra.mxu0 %v327
  %365 = vmatpush.msra.mxu0 %v326
  %366 = vmatpush.msra.mxu0 %v325
  %367 = vmatpush.msra.mxu0 %v324
  %368 = vmatpush.msra.mxu0 %v323
  %369 = vmatpush.msra.mxu0 %v322
  %370 = vmatpush.msra.mxu0 %v321
  %371 = vmatpush.msra.mxu0 %v320
  %372 = vmatmul.f32.gmra.mxu0 %v319
  %v373 = vpop.f32.mrf.mxu0
  %v374 = vadd.f32 0.0, %v373
  %375 = vdwg.mxu0
  %v376 = vmul.f32 %v354, 0.001953125
  %v377 = vmul.f32 %v374, 0.001953125
  %v378 = vmul.f32 %v376, %v376
  %v379 = vsub.f32 %v377, %v378
  %v380 = vmax.f32 %v379, 0.0
  %v381 = vadd.f32 %v380, 1e-05
  %v382 = vrsqrt.pop %v381
  %v383 = vmul.f32 %v382, %v381
  %v384 = vmul.f32 %v383, %v382
  %v385 = vmul.f32 0.5, %v384
  %v386 = vsub.f32 1.5, %v385
  %v387 = vmul.f32 %v382, %v386
  %vm388 = vweird.f32 %v381
  %vm389 = vweird.f32 %v382
  %vm390 = vmor %vm388, %vm389
  %v391 = vsel %vm390, %v382, %v387
  %v392 = vmul.f32 %v296, %v391
  %v393 = vmul.f32 %v376, %v392
  %v394 = vsub.f32 %v297, %v393
  %v395 = vld [vmem:[%s5] sm:$0xff]
  %vm396 = vcmask 64512
  %v398 = vsel %vm396, %v392, 0
  %400 = vmatpush.msra.mxu0 0.0
  %401 = vmatpush.msra.mxu0 0.0
  %402 = vmatpush.msra.mxu0 0.0
  %403 = vmatpush.msra.mxu0 0.0
  %404 = vmatpush.msra.mxu0 0.0
  %405 = vmatpush.msra.mxu0 0.0
  %406 = vmatpush.msra.mxu0 0.0
  %407 = vmatpush.msra.mxu0 0.0
  %408 = vmatpush.msra.mxu0 0.0
  %409 = vmatpush.msra.mxu0 0.0
  %410 = vmatpush.msra.mxu0 0.0
  %411 = vmatpush.msra.mxu0 0.0
  %412 = vmatpush.msra.mxu0 0.0
  %413 = vmatpush.msra.mxu0 0.0
  %414 = vmatpush.msra.mxu0 0.0
  %415 = vmatpush.msra.mxu0 %v395
  %416 = vmatmul.f32.gmra.mxu0 %v398
  %v417 = vpop.f32.mrf.mxu0
  %v418 = vadd.f32 0.0, %v417
  %419 = vdwg.mxu0
  %v421 = vsel %vm396, %v394, 0
  %423 = vmatpush.msra.mxu0 0.0
  %424 = vmatpush.msra.mxu0 0.0
  %425 = vmatpush.msra.mxu0 0.0
  %426 = vmatpush.msra.mxu0 0.0
  %427 = vmatpush.msra.mxu0 0.0
  %428 = vmatpush.msra.mxu0 0.0
  %429 = vmatpush.msra.mxu0 0.0
  %430 = vmatpush.msra.mxu0 0.0
  %431 = vmatpush.msra.mxu0 0.0
  %432 = vmatpush.msra.mxu0 0.0
  %433 = vmatpush.msra.mxu0 0.0
  %434 = vmatpush.msra.mxu0 0.0
  %435 = vmatpush.msra.mxu0 0.0
  %436 = vmatpush.msra.mxu0 0.0
  %437 = vmatpush.msra.mxu0 0.0
  %438 = vmatpush.msra.mxu0 %v395
  %439 = vmatmul.f32.gmra.mxu0 %v421
  %v440 = vpop.f32.mrf.mxu0
  %v441 = vadd.f32 0.0, %v440
  %442 = vdwg.mxu0
  %v443 = vperm.slane %v418, 0
  %v444 = vmul.f32 %v292, %v443
  %v445 = vmul.f32 %v293, %v443
  %v446 = vmul.f32 %v294, %v443
  %v447 = vmul.f32 %v295, %v443
  %v448 = vperm.slane %v441, 0
  %v449 = vadd.f32 %v444, %v448
  %v450 = vadd.f32 %v445, %v448
  %v451 = vadd.f32 %v446, %v448
  %v452 = vadd.f32 %v447, %v448
  %v453 = vmax.f32 %v449, 0.0
  %v454 = vmax.f32 %v450, 0.0
  %v455 = vmax.f32 %v451, 0.0
  %v456 = vmax.f32 %v452, 0.0
  %v457 = vld [vmem:[%s3] sm:$0xff]
  %v458 = vld [vmem:[%s3 + $0x8] sm:$0xff]
  %v459 = vld [vmem:[%s3 + $0x10] sm:$0xff]
  %v460 = vld [vmem:[%s3 + $0x18] sm:$0xff]
  %v461 = vld [vmem:[%s3 + $0x20] sm:$0xff]
  %v462 = vld [vmem:[%s3 + $0x28] sm:$0xff]
  %v463 = vld [vmem:[%s3 + $0x30] sm:$0xff]
  %v464 = vld [vmem:[%s3 + $0x38] sm:$0xff]
  %465 = vmatpush.msra.mxu0 0.0
  %466 = vmatpush.msra.mxu0 0.0
  %467 = vmatpush.msra.mxu0 0.0
  %468 = vmatpush.msra.mxu0 0.0
  %469 = vmatpush.msra.mxu0 0.0
  %470 = vmatpush.msra.mxu0 0.0
  %471 = vmatpush.msra.mxu0 0.0
  %472 = vmatpush.msra.mxu0 0.0
  %473 = vmatpush.msra.mxu0 %v464
  %474 = vmatpush.msra.mxu0 %v463
  %475 = vmatpush.msra.mxu0 %v462
  %476 = vmatpush.msra.mxu0 %v461
  %477 = vmatpush.msra.mxu0 %v460
  %478 = vmatpush.msra.mxu0 %v459
  %479 = vmatpush.msra.mxu0 %v458
  %480 = vmatpush.msra.mxu0 %v457
  %481 = vmatmul.f32.gmra.mxu0 %v202
  %v482 = vpop.f32.mrf.mxu0
  %v483 = vadd.f32 0.0, %v482
  %484 = vmatmul.f32.gmra.mxu0 %v205
  %v485 = vpop.f32.mrf.mxu0
  %v486 = vadd.f32 0.0, %v485
  %487 = vmatmul.f32.gmra.mxu0 %v208
  %v488 = vpop.f32.mrf.mxu0
  %v489 = vadd.f32 0.0, %v488
  %490 = vmatmul.f32.gmra.mxu0 %v211
  %v491 = vpop.f32.mrf.mxu0
  %v492 = vadd.f32 0.0, %v491
  %493 = vdwg.mxu0
  %v494 = vld [vmem:[%s12] sm:$0x1]
  %v495 = vld [vmem:[%s13] sm:$0x1]
  %v496 = vadd.f32 %v483, %v486
  %v497 = vadd.f32 %v496, %v489
  %v498 = vadd.f32 %v497, %v492
  %v499 = vrot.slane %v498, 4
  %v500 = vadd.f32 %v498, %v499
  %v501 = vrot.slane %v500, 2
  %v502 = vadd.f32 %v500, %v501
  %v503 = vrot.slane %v502, 1
  %v504 = vadd.f32 %v502, %v503
  %v505 = vmul.f32 %v483, %v483
  %v506 = vmul.f32 %v486, %v486
  %v507 = vmul.f32 %v489, %v489
  %v508 = vmul.f32 %v492, %v492
  %v509 = vadd.f32 %v505, %v506
  %v510 = vadd.f32 %v509, %v507
  %v511 = vadd.f32 %v510, %v508
  %v512 = vrot.slane %v511, 4
  %v513 = vadd.f32 %v511, %v512
  %v514 = vrot.slane %v513, 2
  %v515 = vadd.f32 %v513, %v514
  %v516 = vrot.slane %v515, 1
  %v517 = vadd.f32 %v515, %v516
  %518 = vmatpush.msra.mxu0 %v335
  %519 = vmatpush.msra.mxu0 %v334
  %520 = vmatpush.msra.mxu0 %v333
  %521 = vmatpush.msra.mxu0 %v332
  %522 = vmatpush.msra.mxu0 %v331
  %523 = vmatpush.msra.mxu0 %v330
  %524 = vmatpush.msra.mxu0 %v329
  %525 = vmatpush.msra.mxu0 %v328
  %526 = vmatpush.msra.mxu0 %v327
  %527 = vmatpush.msra.mxu0 %v326
  %528 = vmatpush.msra.mxu0 %v325
  %529 = vmatpush.msra.mxu0 %v324
  %530 = vmatpush.msra.mxu0 %v323
  %531 = vmatpush.msra.mxu0 %v322
  %532 = vmatpush.msra.mxu0 %v321
  %533 = vmatpush.msra.mxu0 %v320
  %534 = vmatmul.f32.gmra.mxu0 %v504
  %v535 = vpop.f32.mrf.mxu0
  %v536 = vadd.f32 0.0, %v535
  %537 = vdwg.mxu0
  %538 = vmatpush.msra.mxu0 %v335
  %539 = vmatpush.msra.mxu0 %v334
  %540 = vmatpush.msra.mxu0 %v333
  %541 = vmatpush.msra.mxu0 %v332
  %542 = vmatpush.msra.mxu0 %v331
  %543 = vmatpush.msra.mxu0 %v330
  %544 = vmatpush.msra.mxu0 %v329
  %545 = vmatpush.msra.mxu0 %v328
  %546 = vmatpush.msra.mxu0 %v327
  %547 = vmatpush.msra.mxu0 %v326
  %548 = vmatpush.msra.mxu0 %v325
  %549 = vmatpush.msra.mxu0 %v324
  %550 = vmatpush.msra.mxu0 %v323
  %551 = vmatpush.msra.mxu0 %v322
  %552 = vmatpush.msra.mxu0 %v321
  %553 = vmatpush.msra.mxu0 %v320
  %554 = vmatmul.f32.gmra.mxu0 %v517
  %v555 = vpop.f32.mrf.mxu0
  %v556 = vadd.f32 0.0, %v555
  %557 = vdwg.mxu0
  %v558 = vmul.f32 %v536, 0.001953125
  %v559 = vmul.f32 %v556, 0.001953125
  %v560 = vmul.f32 %v558, %v558
  %v561 = vsub.f32 %v559, %v560
  %v562 = vmax.f32 %v561, 0.0
  %v563 = vadd.f32 %v562, 1e-05
  %v564 = vrsqrt.pop %v563
  %v565 = vmul.f32 %v564, %v563
  %v566 = vmul.f32 %v565, %v564
  %v567 = vmul.f32 0.5, %v566
  %v568 = vsub.f32 1.5, %v567
  %v569 = vmul.f32 %v564, %v568
  %vm570 = vweird.f32 %v563
  %vm571 = vweird.f32 %v564
  %vm572 = vmor %vm570, %vm571
  %v573 = vsel %vm572, %v564, %v569
  %v574 = vmul.f32 %v494, %v573
  %v575 = vmul.f32 %v558, %v574
  %v576 = vsub.f32 %v495, %v575
  %v578 = vsel %vm396, %v574, 0
  %580 = vmatpush.msra.mxu0 0.0
  %581 = vmatpush.msra.mxu0 0.0
  %582 = vmatpush.msra.mxu0 0.0
  %583 = vmatpush.msra.mxu0 0.0
  %584 = vmatpush.msra.mxu0 0.0
  %585 = vmatpush.msra.mxu0 0.0
  %586 = vmatpush.msra.mxu0 0.0
  %587 = vmatpush.msra.mxu0 0.0
  %588 = vmatpush.msra.mxu0 0.0
  %589 = vmatpush.msra.mxu0 0.0
  %590 = vmatpush.msra.mxu0 0.0
  %591 = vmatpush.msra.mxu0 0.0
  %592 = vmatpush.msra.mxu0 0.0
  %593 = vmatpush.msra.mxu0 0.0
  %594 = vmatpush.msra.mxu0 0.0
  %595 = vmatpush.msra.mxu0 %v395
  %596 = vmatmul.f32.gmra.mxu0 %v578
  %v597 = vpop.f32.mrf.mxu0
  %v598 = vadd.f32 0.0, %v597
  %599 = vdwg.mxu0
  %v601 = vsel %vm396, %v576, 0
  %603 = vmatpush.msra.mxu0 0.0
  %604 = vmatpush.msra.mxu0 0.0
  %605 = vmatpush.msra.mxu0 0.0
  %606 = vmatpush.msra.mxu0 0.0
  %607 = vmatpush.msra.mxu0 0.0
  %608 = vmatpush.msra.mxu0 0.0
  %609 = vmatpush.msra.mxu0 0.0
  %610 = vmatpush.msra.mxu0 0.0
  %611 = vmatpush.msra.mxu0 0.0
  %612 = vmatpush.msra.mxu0 0.0
  %613 = vmatpush.msra.mxu0 0.0
  %614 = vmatpush.msra.mxu0 0.0
  %615 = vmatpush.msra.mxu0 0.0
  %616 = vmatpush.msra.mxu0 0.0
  %617 = vmatpush.msra.mxu0 0.0
  %618 = vmatpush.msra.mxu0 %v395
  %619 = vmatmul.f32.gmra.mxu0 %v601
  %v620 = vpop.f32.mrf.mxu0
  %v621 = vadd.f32 0.0, %v620
  %622 = vdwg.mxu0
  %v623 = vperm.slane %v598, 0
  %v624 = vmul.f32 %v483, %v623
  %v625 = vmul.f32 %v486, %v623
  %v626 = vmul.f32 %v489, %v623
  %v627 = vmul.f32 %v492, %v623
  %v628 = vperm.slane %v621, 0
  %v629 = vadd.f32 %v624, %v628
  %v630 = vadd.f32 %v625, %v628
  %v631 = vadd.f32 %v626, %v628
  %v632 = vadd.f32 %v627, %v628
  %633 = vmatpush.msra.mxu0 0.0
  %634 = vmatpush.msra.mxu0 0.0
  %635 = vmatpush.msra.mxu0 0.0
  %636 = vmatpush.msra.mxu0 0.0
  %637 = vmatpush.msra.mxu0 0.0
  %638 = vmatpush.msra.mxu0 0.0
  %639 = vmatpush.msra.mxu0 0.0
  %640 = vmatpush.msra.mxu0 0.0
  %641 = vmatpush.msra.mxu0 0.0
  %642 = vmatpush.msra.mxu0 0.0
  %643 = vmatpush.msra.mxu0 0.0
  %644 = vmatpush.msra.mxu0 0.0
  %645 = vmatpush.msra.mxu0 %v456
  %646 = vmatpush.msra.mxu0 %v455
  %647 = vmatpush.msra.mxu0 %v454
  %648 = vmatpush.msra.mxu0 %v453
  %649 = vmatmul.f32.gmra.mxu0 %v61
  %v650 = vpop.f32.mrf.mxu0
  %v651 = vadd.f32 0.0, %v650
  %652 = vmatmul.f32.gmra.mxu0 %v64
  %v653 = vpop.f32.mrf.mxu0
  %v654 = vadd.f32 0.0, %v653
  %655 = vmatmul.f32.gmra.mxu0 %v67
  %v656 = vpop.f32.mrf.mxu0
  %v657 = vadd.f32 0.0, %v656
  %658 = vmatmul.f32.gmra.mxu0 %v70
  %v659 = vpop.f32.mrf.mxu0
  %v660 = vadd.f32 0.0, %v659
  %661 = vdwg.mxu0
  %662 = vmatpush.msra.mxu0 0.0
  %663 = vmatpush.msra.mxu0 0.0
  %664 = vmatpush.msra.mxu0 0.0
  %665 = vmatpush.msra.mxu0 0.0
  %666 = vmatpush.msra.mxu0 0.0
  %667 = vmatpush.msra.mxu0 0.0
  %668 = vmatpush.msra.mxu0 0.0
  %669 = vmatpush.msra.mxu0 0.0
  %670 = vmatpush.msra.mxu0 0.0
  %671 = vmatpush.msra.mxu0 0.0
  %672 = vmatpush.msra.mxu0 0.0
  %673 = vmatpush.msra.mxu0 0.0
  %674 = vmatpush.msra.mxu0 %v456
  %675 = vmatpush.msra.mxu0 %v455
  %676 = vmatpush.msra.mxu0 %v454
  %677 = vmatpush.msra.mxu0 %v453
  %678 = vmatmul.f32.gmra.mxu0 %v102
  %v679 = vpop.f32.mrf.mxu0
  %v680 = vadd.f32 0.0, %v679
  %681 = vmatmul.f32.gmra.mxu0 %v105
  %v682 = vpop.f32.mrf.mxu0
  %v683 = vadd.f32 0.0, %v682
  %684 = vmatmul.f32.gmra.mxu0 %v108
  %v685 = vpop.f32.mrf.mxu0
  %v686 = vadd.f32 0.0, %v685
  %687 = vmatmul.f32.gmra.mxu0 %v111
  %v688 = vpop.f32.mrf.mxu0
  %v689 = vadd.f32 0.0, %v688
  %690 = vdwg.mxu0
  %s691 = scalar_lea.vmem %s2, 128
  %v692 = vld [vmem:[%s691] sm:$0xff]
  %v693 = vld [vmem:[%s691 + $0x8] sm:$0xff]
  %v694 = vld [vmem:[%s691 + $0x10] sm:$0xff]
  %v695 = vld [vmem:[%s691 + $0x18] sm:$0xff]
  %v696 = vld [vmem:[%s691 + $0x20] sm:$0xff]
  %v697 = vld [vmem:[%s691 + $0x28] sm:$0xff]
  %v698 = vld [vmem:[%s691 + $0x30] sm:$0xff]
  %v699 = vld [vmem:[%s691 + $0x38] sm:$0xff]
  %v700 = vld [vmem:[%s691 + $0x40] sm:$0xff]
  %v701 = vld [vmem:[%s691 + $0x48] sm:$0xff]
  %v702 = vld [vmem:[%s691 + $0x50] sm:$0xff]
  %v703 = vld [vmem:[%s691 + $0x58] sm:$0xff]
  %v704 = vld [vmem:[%s691 + $0x60] sm:$0xff]
  %v705 = vld [vmem:[%s691 + $0x68] sm:$0xff]
  %v706 = vld [vmem:[%s691 + $0x70] sm:$0xff]
  %v707 = vld [vmem:[%s691 + $0x78] sm:$0xff]
  %v708 = vld [vmem:[%s2] sm:$0xff]
  %v709 = vld [vmem:[%s2 + $0x8] sm:$0xff]
  %v710 = vld [vmem:[%s2 + $0x10] sm:$0xff]
  %v711 = vld [vmem:[%s2 + $0x18] sm:$0xff]
  %v712 = vld [vmem:[%s2 + $0x20] sm:$0xff]
  %v713 = vld [vmem:[%s2 + $0x28] sm:$0xff]
  %v714 = vld [vmem:[%s2 + $0x30] sm:$0xff]
  %v715 = vld [vmem:[%s2 + $0x38] sm:$0xff]
  %v716 = vld [vmem:[%s2 + $0x40] sm:$0xff]
  %v717 = vld [vmem:[%s2 + $0x48] sm:$0xff]
  %v718 = vld [vmem:[%s2 + $0x50] sm:$0xff]
  %v719 = vld [vmem:[%s2 + $0x58] sm:$0xff]
  %v720 = vld [vmem:[%s2 + $0x60] sm:$0xff]
  %v721 = vld [vmem:[%s2 + $0x68] sm:$0xff]
  %v722 = vld [vmem:[%s2 + $0x70] sm:$0xff]
  %v723 = vld [vmem:[%s2 + $0x78] sm:$0xff]
  %724 = vmatpush.msra.mxu0 %v723
  %725 = vmatpush.msra.mxu0 %v722
  %726 = vmatpush.msra.mxu0 %v721
  %727 = vmatpush.msra.mxu0 %v720
  %728 = vmatpush.msra.mxu0 %v719
  %729 = vmatpush.msra.mxu0 %v718
  %730 = vmatpush.msra.mxu0 %v717
  %731 = vmatpush.msra.mxu0 %v716
  %732 = vmatpush.msra.mxu0 %v715
  %733 = vmatpush.msra.mxu0 %v714
  %734 = vmatpush.msra.mxu0 %v713
  %735 = vmatpush.msra.mxu0 %v712
  %736 = vmatpush.msra.mxu0 %v711
  %737 = vmatpush.msra.mxu0 %v710
  %738 = vmatpush.msra.mxu0 %v709
  %739 = vmatpush.msra.mxu0 %v708
  %740 = vmatmul.f32.gmra.mxu0 %v651
  %v741 = vpop.f32.mrf.mxu0
  %v742 = vadd.f32 0.0, %v741
  %743 = vmatmul.f32.gmra.mxu0 %v654
  %v744 = vpop.f32.mrf.mxu0
  %v745 = vadd.f32 0.0, %v744
  %746 = vmatmul.f32.gmra.mxu0 %v657
  %v747 = vpop.f32.mrf.mxu0
  %v748 = vadd.f32 0.0, %v747
  %749 = vmatmul.f32.gmra.mxu0 %v660
  %v750 = vpop.f32.mrf.mxu0
  %v751 = vadd.f32 0.0, %v750
  %752 = vdwg.mxu0
  %753 = vmatpush.msra.mxu0 %v707
  %754 = vmatpush.msra.mxu0 %v706
  %755 = vmatpush.msra.mxu0 %v705
  %756 = vmatpush.msra.mxu0 %v704
  %757 = vmatpush.msra.mxu0 %v703
  %758 = vmatpush.msra.mxu0 %v702
  %759 = vmatpush.msra.mxu0 %v701
  %760 = vmatpush.msra.mxu0 %v700
  %761 = vmatpush.msra.mxu0 %v699
  %762 = vmatpush.msra.mxu0 %v698
  %763 = vmatpush.msra.mxu0 %v697
  %764 = vmatpush.msra.mxu0 %v696
  %765 = vmatpush.msra.mxu0 %v695
  %766 = vmatpush.msra.mxu0 %v694
  %767 = vmatpush.msra.mxu0 %v693
  %768 = vmatpush.msra.mxu0 %v692
  %769 = vmatmul.f32.gmra.mxu0 %v453
  %v770 = vpop.f32.mrf.mxu0
  %v771 = vadd.f32 %v742, %v770
  %772 = vmatmul.f32.gmra.mxu0 %v454
  %v773 = vpop.f32.mrf.mxu0
  %v774 = vadd.f32 %v745, %v773
  %775 = vmatmul.f32.gmra.mxu0 %v455
  %v776 = vpop.f32.mrf.mxu0
  %v777 = vadd.f32 %v748, %v776
  %778 = vmatmul.f32.gmra.mxu0 %v456
  %v779 = vpop.f32.mrf.mxu0
  %v780 = vadd.f32 %v751, %v779
  %781 = vdwg.mxu0
  %s782 = scalar_lea.vmem %s2, 256
  %v783 = vld [vmem:[%s782] sm:$0xff]
  %v784 = vld [vmem:[%s782 + $0x8] sm:$0xff]
  %v785 = vld [vmem:[%s782 + $0x10] sm:$0xff]
  %v786 = vld [vmem:[%s782 + $0x18] sm:$0xff]
  %v787 = vld [vmem:[%s782 + $0x20] sm:$0xff]
  %v788 = vld [vmem:[%s782 + $0x28] sm:$0xff]
  %v789 = vld [vmem:[%s782 + $0x30] sm:$0xff]
  %v790 = vld [vmem:[%s782 + $0x38] sm:$0xff]
  %v791 = vld [vmem:[%s782 + $0x40] sm:$0xff]
  %v792 = vld [vmem:[%s782 + $0x48] sm:$0xff]
  %v793 = vld [vmem:[%s782 + $0x50] sm:$0xff]
  %v794 = vld [vmem:[%s782 + $0x58] sm:$0xff]
  %v795 = vld [vmem:[%s782 + $0x60] sm:$0xff]
  %v796 = vld [vmem:[%s782 + $0x68] sm:$0xff]
  %v797 = vld [vmem:[%s782 + $0x70] sm:$0xff]
  %v798 = vld [vmem:[%s782 + $0x78] sm:$0xff]
  %799 = vmatpush.msra.mxu0 %v798
  %800 = vmatpush.msra.mxu0 %v797
  %801 = vmatpush.msra.mxu0 %v796
  %802 = vmatpush.msra.mxu0 %v795
  %803 = vmatpush.msra.mxu0 %v794
  %804 = vmatpush.msra.mxu0 %v793
  %805 = vmatpush.msra.mxu0 %v792
  %806 = vmatpush.msra.mxu0 %v791
  %807 = vmatpush.msra.mxu0 %v790
  %808 = vmatpush.msra.mxu0 %v789
  %809 = vmatpush.msra.mxu0 %v788
  %810 = vmatpush.msra.mxu0 %v787
  %811 = vmatpush.msra.mxu0 %v786
  %812 = vmatpush.msra.mxu0 %v785
  %813 = vmatpush.msra.mxu0 %v784
  %814 = vmatpush.msra.mxu0 %v783
  %815 = vmatmul.f32.gmra.mxu0 %v680
  %v816 = vpop.f32.mrf.mxu0
  %v817 = vadd.f32 0.0, %v816
  %818 = vmatmul.f32.gmra.mxu0 %v683
  %v819 = vpop.f32.mrf.mxu0
  %v820 = vadd.f32 0.0, %v819
  %821 = vmatmul.f32.gmra.mxu0 %v686
  %v822 = vpop.f32.mrf.mxu0
  %v823 = vadd.f32 0.0, %v822
  %824 = vmatmul.f32.gmra.mxu0 %v689
  %v825 = vpop.f32.mrf.mxu0
  %v826 = vadd.f32 0.0, %v825
  %827 = vdwg.mxu0
  %v828 = vadd.f32 %v771, %v817
  %v829 = vadd.f32 %v774, %v820
  %v830 = vadd.f32 %v777, %v823
  %v831 = vadd.f32 %v780, %v826
  %v832 = vld [vmem:[%s10] sm:$0x1]
  %v833 = vld [vmem:[%s11] sm:$0x1]
  %v834 = vadd.f32 %v828, %v829
  %v835 = vadd.f32 %v834, %v830
  %v836 = vadd.f32 %v835, %v831
  %v837 = vrot.slane %v836, 4
  %v838 = vadd.f32 %v836, %v837
  %v839 = vrot.slane %v838, 2
  %v840 = vadd.f32 %v838, %v839
  %v841 = vrot.slane %v840, 1
  %v842 = vadd.f32 %v840, %v841
  %v843 = vmul.f32 %v828, %v828
  %v844 = vmul.f32 %v829, %v829
  %v845 = vmul.f32 %v830, %v830
  %v846 = vmul.f32 %v831, %v831
  %v847 = vadd.f32 %v843, %v844
  %v848 = vadd.f32 %v847, %v845
  %v849 = vadd.f32 %v848, %v846
  %v850 = vrot.slane %v849, 4
  %v851 = vadd.f32 %v849, %v850
  %v852 = vrot.slane %v851, 2
  %v853 = vadd.f32 %v851, %v852
  %v854 = vrot.slane %v853, 1
  %v855 = vadd.f32 %v853, %v854
  %856 = vmatpush.msra.mxu0 %v335
  %857 = vmatpush.msra.mxu0 %v334
  %858 = vmatpush.msra.mxu0 %v333
  %859 = vmatpush.msra.mxu0 %v332
  %860 = vmatpush.msra.mxu0 %v331
  %861 = vmatpush.msra.mxu0 %v330
  %862 = vmatpush.msra.mxu0 %v329
  %863 = vmatpush.msra.mxu0 %v328
  %864 = vmatpush.msra.mxu0 %v327
  %865 = vmatpush.msra.mxu0 %v326
  %866 = vmatpush.msra.mxu0 %v325
  %867 = vmatpush.msra.mxu0 %v324
  %868 = vmatpush.msra.mxu0 %v323
  %869 = vmatpush.msra.mxu0 %v322
  %870 = vmatpush.msra.mxu0 %v321
  %871 = vmatpush.msra.mxu0 %v320
  %872 = vmatmul.f32.gmra.mxu0 %v842
  %v873 = vpop.f32.mrf.mxu0
  %v874 = vadd.f32 0.0, %v873
  %875 = vdwg.mxu0
  %876 = vmatpush.msra.mxu0 %v335
  %877 = vmatpush.msra.mxu0 %v334
  %878 = vmatpush.msra.mxu0 %v333
  %879 = vmatpush.msra.mxu0 %v332
  %880 = vmatpush.msra.mxu0 %v331
  %881 = vmatpush.msra.mxu0 %v330
  %882 = vmatpush.msra.mxu0 %v329
  %883 = vmatpush.msra.mxu0 %v328
  %884 = vmatpush.msra.mxu0 %v327
  %885 = vmatpush.msra.mxu0 %v326
  %886 = vmatpush.msra.mxu0 %v325
  %887 = vmatpush.msra.mxu0 %v324
  %888 = vmatpush.msra.mxu0 %v323
  %889 = vmatpush.msra.mxu0 %v322
  %890 = vmatpush.msra.mxu0 %v321
  %891 = vmatpush.msra.mxu0 %v320
  %892 = vmatmul.f32.gmra.mxu0 %v855
  %v893 = vpop.f32.mrf.mxu0
  %v894 = vadd.f32 0.0, %v893
  %895 = vdwg.mxu0
  %v896 = vmul.f32 %v874, 0.001953125
  %v897 = vmul.f32 %v894, 0.001953125
  %v898 = vmul.f32 %v896, %v896
  %v899 = vsub.f32 %v897, %v898
  %v900 = vmax.f32 %v899, 0.0
  %v901 = vadd.f32 %v900, 1e-05
  %v902 = vrsqrt.pop %v901
  %v903 = vmul.f32 %v902, %v901
  %v904 = vmul.f32 %v903, %v902
  %v905 = vmul.f32 0.5, %v904
  %v906 = vsub.f32 1.5, %v905
  %v907 = vmul.f32 %v902, %v906
  %vm908 = vweird.f32 %v901
  %vm909 = vweird.f32 %v902
  %vm910 = vmor %vm908, %vm909
  %v911 = vsel %vm910, %v902, %v907
  %v912 = vmul.f32 %v832, %v911
  %v913 = vmul.f32 %v896, %v912
  %v914 = vsub.f32 %v833, %v913
  %v916 = vsel %vm396, %v912, 0
  %918 = vmatpush.msra.mxu0 0.0
  %919 = vmatpush.msra.mxu0 0.0
  %920 = vmatpush.msra.mxu0 0.0
  %921 = vmatpush.msra.mxu0 0.0
  %922 = vmatpush.msra.mxu0 0.0
  %923 = vmatpush.msra.mxu0 0.0
  %924 = vmatpush.msra.mxu0 0.0
  %925 = vmatpush.msra.mxu0 0.0
  %926 = vmatpush.msra.mxu0 0.0
  %927 = vmatpush.msra.mxu0 0.0
  %928 = vmatpush.msra.mxu0 0.0
  %929 = vmatpush.msra.mxu0 0.0
  %930 = vmatpush.msra.mxu0 0.0
  %931 = vmatpush.msra.mxu0 0.0
  %932 = vmatpush.msra.mxu0 0.0
  %933 = vmatpush.msra.mxu0 %v395
  %934 = vmatmul.f32.gmra.mxu0 %v916
  %v935 = vpop.f32.mrf.mxu0
  %v936 = vadd.f32 0.0, %v935
  %937 = vdwg.mxu0
  %v939 = vsel %vm396, %v914, 0
  %941 = vmatpush.msra.mxu0 0.0
  %942 = vmatpush.msra.mxu0 0.0
  %943 = vmatpush.msra.mxu0 0.0
  %944 = vmatpush.msra.mxu0 0.0
  %945 = vmatpush.msra.mxu0 0.0
  %946 = vmatpush.msra.mxu0 0.0
  %947 = vmatpush.msra.mxu0 0.0
  %948 = vmatpush.msra.mxu0 0.0
  %949 = vmatpush.msra.mxu0 0.0
  %950 = vmatpush.msra.mxu0 0.0
  %951 = vmatpush.msra.mxu0 0.0
  %952 = vmatpush.msra.mxu0 0.0
  %953 = vmatpush.msra.mxu0 0.0
  %954 = vmatpush.msra.mxu0 0.0
  %955 = vmatpush.msra.mxu0 0.0
  %956 = vmatpush.msra.mxu0 %v395
  %957 = vmatmul.f32.gmra.mxu0 %v939
  %v958 = vpop.f32.mrf.mxu0
  %v959 = vadd.f32 0.0, %v958
  %960 = vdwg.mxu0
  %v961 = vperm.slane %v936, 0
  %v962 = vmul.f32 %v828, %v961
  %v963 = vmul.f32 %v829, %v961
  %v964 = vmul.f32 %v830, %v961
  %v965 = vmul.f32 %v831, %v961
  %v966 = vperm.slane %v959, 0
  %v967 = vadd.f32 %v962, %v966
  %v968 = vadd.f32 %v963, %v966
  %v969 = vadd.f32 %v964, %v966
  %v970 = vadd.f32 %v965, %v966
  %v971 = vmax.f32 %v967, 0.0
  %v972 = vmax.f32 %v968, 0.0
  %v973 = vmax.f32 %v969, 0.0
  %v974 = vmax.f32 %v970, 0.0
  %v975 = vadd.f32 %v971, %v629
  %v976 = vadd.f32 %v972, %v630
  %v977 = vadd.f32 %v973, %v631
  %v978 = vadd.f32 %v974, %v632
  %979 = vst [vmem:[%s14] sm:$0xff] %v975
  %980 = vst [vmem:[%s14 + $0x8] sm:$0xff] %v976
  %981 = vst [vmem:[%s14 + $0x10] sm:$0xff] %v977
  %982 = vst [vmem:[%s14 + $0x18] sm:$0xff] %v978
  // Predicated region
  $region58: #{residual_block_forward.1} parent=0 // pred_check
    _
  $region59: #{residual_block_forward.1} parent=0 // pred_check_branch
    %984 = sbr.rel (0) target = $region61
  $region60: #{residual_block_forward.1} parent=0 // pred_region
    _
  $region61: #{residual_block_forward.1} parent=0 // pred_fallthru
    _
  // Predicated region
  $region62: #{residual_block_forward.1} parent=0 // pred_check
    _
  $region63: #{residual_block_forward.1} parent=0 // pred_check_branch
    %986 = sbr.rel (0) target = $region65
  $region64: #{residual_block_forward.1} parent=0 // pred_region
    _
  $region65: #{residual_block_forward.1} parent=0 // pred_fallthru
    _

</llo_original>
